<compile_context>
chip_gen: v6e
topology: v6e:2x2x1
jax: 0.10.0
libtpu: 0.0.40
codegen_flags: <defaults>
</compile_context>

<pallas_src>
import functools
import math

import jax
import jax.numpy as jnp
from jax import lax
from jax.experimental import pallas as pl
from jax.experimental.pallas import tpu as pltpu

ALPHA = 0.25
BETA = 0.75
GAMMA = 2.0
SMOOTH = 1e-6

LANES = 128
SUBLANES = 8
CHUNK_ROWS = 64          # rows per fused accumulate step (8 vregs/tensor f32)
MAX_BLOCK_ROWS = 4096    # 4096 x 128 f32 = 2 MiB per input per pipeline buffer
NUM_SHARDS = 2           # leading "parallel" axis (v7x: one shard per TC)


def _round_up(x, m):
    return ((x + m - 1) // m) * m


def _partial_sums_kernel(x_ref, t_ref, out_ref, acc_ref, *,
                         block_rows, chunk_rows, rows_valid,
                         blocks_per_shard, has_tail):
    c = pl.program_id(0)          # shard (parallel)
    i = pl.program_id(1)          # block within shard (reduction)

    @pl.when(i == 0)
    def _():
        acc_ref[...] = jnp.zeros_like(acc_ref)

    logical_block = c * blocks_per_shard + i
    base_row = logical_block * block_rows
    n_chunks = block_rows // chunk_rows
    fold_groups = chunk_rows // SUBLANES

    def fold(v):
        # (chunk_rows,128) -> (8,128): pure element-wise VPU adds.
        if fold_groups == 1:
            return v
        return jnp.sum(v.reshape(fold_groups, SUBLANES, LANES), axis=0)

    def sigmoid(x):
        # EUP-friendly sigmoid; avoids the exact f32 divide on the VALU.
        return 0.5 * jnp.tanh(0.5 * x) + 0.5

    def chunk_body(ci, carry, masked):
        a_pt, a_p, a_t = carry
        r0 = ci * chunk_rows
        if not isinstance(ci, int):
            r0 = pl.multiple_of(r0, chunk_rows)
        x = x_ref[pl.ds(r0, chunk_rows), :].astype(jnp.float32)
        t = t_ref[pl.ds(r0, chunk_rows), :].astype(jnp.float32)
        p = sigmoid(x)
        if masked:
            rid = lax.broadcasted_iota(jnp.int32, (chunk_rows, LANES), 0)
            valid = (base_row + r0 + rid) < rows_valid
            p = jnp.where(valid, p, 0.0)
            t = jnp.where(valid, t, 0.0)
        return (a_pt + fold(p * t), a_p + fold(p), a_t + fold(t))

    def accumulate(masked):
        init = (acc_ref[0], acc_ref[1], acc_ref[2])
        if n_chunks == 1:
            a_pt, a_p, a_t = chunk_body(0, init, masked)
        else:
            a_pt, a_p, a_t = lax.fori_loop(
                0, n_chunks, lambda ci, cr: chunk_body(ci, cr, masked), init)
        acc_ref[0] = a_pt
        acc_ref[1] = a_p
        acc_ref[2] = a_t

    if not has_tail:
        accumulate(masked=False)
    else:
        full = base_row + block_rows <= rows_valid

        @pl.when(full)
        def _():
            accumulate(masked=False)

        @pl.when(jnp.logical_not(full))
        def _():
            accumulate(masked=True)

    @pl.when(i == pl.num_programs(1) - 1)
    def _():
        out_ref[0, 0] = jnp.sum(acc_ref[0])   # sum(p*t)
        out_ref[0, 1] = jnp.sum(acc_ref[1])   # sum(p)
        out_ref[0, 2] = jnp.sum(acc_ref[2])   # sum(t)


def focal_tversky_loss(logits, targets, *, alpha=ALPHA, beta=BETA,
                       gamma=GAMMA, smooth=SMOOTH):
    """logits, targets: same-shape float arrays (e.g. NCHW). Returns f32 scalar."""
    assert logits.shape == targets.shape
    total = math.prod(logits.shape)

    x = logits.reshape(-1)
    t = targets.reshape(-1)

    # Only copy (pad) in the rare case total % 128 != 0; the pad is numerically
    # neutral (sigmoid(-1e9) -> 0, target 0).
    rem = total % LANES
    if rem:
        pad = LANES - rem
        x = jnp.pad(x, (0, pad), constant_values=-1e9)
        t = jnp.pad(t, (0, pad), constant_values=0)

    rows = x.shape[0] // LANES
    x2 = x.reshape(rows, LANES)
    t2 = t.reshape(rows, LANES)

    # Block / chunk selection (block_rows % chunk_rows == 0, both % 8 == 0).
    if rows <= MAX_BLOCK_ROWS:
        block_rows = _round_up(rows, SUBLANES)
        if block_rows > CHUNK_ROWS:
            block_rows = _round_up(block_rows, CHUNK_ROWS)
            chunk_rows = CHUNK_ROWS
        else:
            chunk_rows = block_rows
    else:
        block_rows = MAX_BLOCK_ROWS
        chunk_rows = CHUNK_ROWS

    num_blocks = pl.cdiv(rows, block_rows)
    num_shards = NUM_SHARDS if num_blocks >= NUM_SHARDS else 1
    blocks_per_shard = pl.cdiv(num_blocks, num_shards)
    has_tail = (num_blocks * block_rows != rows or
                num_shards * blocks_per_shard != num_blocks)

    def in_index_map(c, i):
        # Clamp so the (at most one) overhanging logical block re-reads the
        # last real block; the kernel fully masks its contribution.
        return (jnp.minimum(c * blocks_per_shard + i, num_blocks - 1), 0)

    spec_kwargs = {}
    if num_blocks >= 3:
        spec_kwargs["pipeline_mode"] = pl.Buffered(3)
    in_spec = pl.BlockSpec((block_rows, LANES), in_index_map, **spec_kwargs)

    kernel = functools.partial(
        _partial_sums_kernel, block_rows=block_rows, chunk_rows=chunk_rows,
        rows_valid=rows, blocks_per_shard=blocks_per_shard, has_tail=has_tail)

    partial = pl.pallas_call(
        kernel,
        out_shape=jax.ShapeDtypeStruct((num_shards, 3), jnp.float32),
        grid=(num_shards, blocks_per_shard),
        in_specs=[in_spec, in_spec],
        out_specs=pl.BlockSpec((1, 3), lambda c, i: (c, 0),
                               memory_space=pltpu.SMEM),
        scratch_shapes=[pltpu.VMEM((3, SUBLANES, LANES), jnp.float32)],
        compiler_params=pltpu.CompilerParams(
            dimension_semantics=("parallel", "arbitrary"),
            vmem_limit_bytes=32 * 1024 * 1024),
    )(x2, t2)

    # Final Tversky / focal math: a handful of scalar FLOPs in the wrapper.
    sums = jnp.sum(partial, axis=0)
    tp = sums[0]
    fp = sums[1] - sums[0]
    fn = sums[2] - sums[0]
    tversky = (tp + smooth) / (tp + alpha * fp + beta * fn + smooth)
    tversky_loss = jnp.maximum(1.0 - tversky, 0.0)  # guard tiny negatives
    return jnp.power(tversky_loss, gamma)


def _reference(logits, targets, *, alpha=ALPHA, beta=BETA, gamma=GAMMA,
               smooth=SMOOTH):
    p = jax.nn.sigmoid(logits.astype(jnp.float32)).reshape(-1)
    t = targets.astype(jnp.float32).reshape(-1)
    tp = jnp.sum(p * t)
    fp = jnp.sum(p * (1.0 - t))
    fn = jnp.sum((1.0 - p) * t)
    tversky = (tp + smooth) / (tp + alpha * fp + beta * fn + smooth)
    return jnp.power(1.0 - tversky, gamma)


if __name__ == "__main__":
    key = jax.random.PRNGKey(0)
    k1, k2 = jax.random.split(key)

    N, C, H, W = 2, 4, 16, 16
    logits = jax.random.normal(k1, (N, C, H, W), dtype=jnp.float32)
    targets = jax.random.bernoulli(k2, p=0.3, shape=(N, C, H, W)).astype(
        jnp.float32)

    loss = jax.block_until_ready(focal_tversky_loss(logits, targets))
    ref = _reference(logits, targets)

    assert jnp.isfinite(loss), "non-finite loss"
    assert abs(float(loss) - float(ref)) < 1e-3, (float(loss), float(ref))
    print("KERNEL_OK")
</pallas_src>

<mosaic_0001>
module attributes {stable_mosaic.version = 11 : i64} {
  func.func @_partial_sums_kernel(%arg0: i32, %arg1: i32, %arg2: memref<16x128xf32, #tpu.memory_space<vmem>>, %arg3: memref<16x128xf32, #tpu.memory_space<vmem>>, %arg4: memref<1x3xf32, #tpu.memory_space<smem>>, %arg5: memref<3x8x128xf32, #tpu.memory_space<vmem>>) attributes {dimension_semantics = [#tpu.dimension_semantics<parallel>, #tpu.dimension_semantics<arbitrary>], iteration_bounds = array<i64: 1, 1>, scalar_prefetch = 0 : i64, scratch_operands = 1 : i64, tpu.core_type = #tpu.core_type<tc>, window_params = [{transform_indices = @transform_0, window_bounds = array<i64: 16, 128>}, {transform_indices = @transform_1, window_bounds = array<i64: 16, 128>}, {transform_indices = @transform_2, window_bounds = array<i64: 1, 3>}]} {
    %c0_i32 = arith.constant 0 : i32
    %0 = arith.cmpi eq, %arg1, %c0_i32 : i32
    %1 = arith.extui %0 : i1 to i32
    %c0_i32_0 = arith.constant 0 : i32
    %2 = arith.cmpi ne, %1, %c0_i32_0 : i32
    scf.if %2 {
      %cst_27 = arith.constant 0.000000e+00 : f32
      %40 = vector.broadcast %cst_27 : f32 to vector<3x8x128xf32>
      %c0_28 = arith.constant 0 : index
      %c0_29 = arith.constant 0 : index
      %c0_30 = arith.constant 0 : index
      %41 = vector.load %arg5[%c0_28, %c0_29, %c0_30] : memref<3x8x128xf32, #tpu.memory_space<vmem>>, vector<3x8x128xf32>
      tpu.vector_store %arg5[%c0_28, %c0_29, %c0_30], %40 {strides = array<i32>} : memref<3x8x128xf32, #tpu.memory_space<vmem>>, vector<3x8x128xf32>,
    } else {
    }
    %c0 = arith.constant 0 : index
    %c0_1 = arith.constant 0 : index
    %c0_2 = arith.constant 0 : index
    %3 = vector.load %arg5[%c0, %c0_1, %c0_2] : memref<3x8x128xf32, #tpu.memory_space<vmem>>, vector<1x8x128xf32>
    %4 = vector.shape_cast %3 : vector<1x8x128xf32> to vector<8x128xf32>
    %c1 = arith.constant 1 : index
    %c0_3 = arith.constant 0 : index
    %c0_4 = arith.constant 0 : index
    %5 = vector.load %arg5[%c1, %c0_3, %c0_4] : memref<3x8x128xf32, #tpu.memory_space<vmem>>, vector<1x8x128xf32>
    %6 = vector.shape_cast %5 : vector<1x8x128xf32> to vector<8x128xf32>
    %c2 = arith.constant 2 : index
    %c0_5 = arith.constant 0 : index
    %c0_6 = arith.constant 0 : index
    %7 = vector.load %arg5[%c2, %c0_5, %c0_6] : memref<3x8x128xf32, #tpu.memory_space<vmem>>, vector<1x8x128xf32>
    %8 = vector.shape_cast %7 : vector<1x8x128xf32> to vector<8x128xf32>
    %c0_7 = arith.constant 0 : index
    %c0_8 = arith.constant 0 : index
    %9 = vector.load %arg2[%c0_7, %c0_8] : memref<16x128xf32, #tpu.memory_space<vmem>>, vector<16x128xf32>
    %c0_9 = arith.constant 0 : index
    %c0_10 = arith.constant 0 : index
    %10 = vector.load %arg3[%c0_9, %c0_10] : memref<16x128xf32, #tpu.memory_space<vmem>>, vector<16x128xf32>
    %cst = arith.constant 5.000000e-01 : f32
    %11 = vector.broadcast %cst : f32 to vector<16x128xf32>
    %12 = arith.mulf %11, %9 : vector<16x128xf32>
    %13 = math.tanh %12 : vector<16x128xf32>
    %cst_11 = arith.constant 5.000000e-01 : f32
    %14 = vector.broadcast %cst_11 : f32 to vector<16x128xf32>
    %15 = arith.mulf %14, %13 : vector<16x128xf32>
    %cst_12 = arith.constant 5.000000e-01 : f32
    %16 = vector.broadcast %cst_12 : f32 to vector<16x128xf32>
    %17 = arith.addf %15, %16 : vector<16x128xf32>
    %18 = arith.mulf %17, %10 : vector<16x128xf32>
    %19 = vector.shape_cast %18 : vector<16x128xf32> to vector<2x8x128xf32>
    %cst_13 = arith.constant dense<0.000000e+00> : vector<8x128xf32>
    %20 = vector.multi_reduction <add>, %19, %cst_13 [0] : vector<2x8x128xf32> to vector<8x128xf32>
    %21 = arith.addf %4, %20 : vector<8x128xf32>
    %22 = vector.shape_cast %17 : vector<16x128xf32> to vector<2x8x128xf32>
    %cst_14 = arith.constant dense<0.000000e+00> : vector<8x128xf32>
    %23 = vector.multi_reduction <add>, %22, %cst_14 [0] : vector<2x8x128xf32> to vector<8x128xf32>
    %24 = arith.addf %6, %23 : vector<8x128xf32>
    %25 = vector.shape_cast %10 : vector<16x128xf32> to vector<2x8x128xf32>
    %cst_15 = arith.constant dense<0.000000e+00> : vector<8x128xf32>
    %26 = vector.multi_reduction <add>, %25, %cst_15 [0] : vector<2x8x128xf32> to vector<8x128xf32>
    %27 = arith.addf %8, %26 : vector<8x128xf32>
    %c0_16 = arith.constant 0 : index
    %c0_17 = arith.constant 0 : index
    %c0_18 = arith.constant 0 : index
    %28 = vector.load %arg5[%c0_16, %c0_17, %c0_18] : memref<3x8x128xf32, #tpu.memory_space<vmem>>, vector<1x8x128xf32>
    %29 = vector.shape_cast %28 : vector<1x8x128xf32> to vector<8x128xf32>
    %30 = vector.shape_cast %21 : vector<8x128xf32> to vector<1x8x128xf32>
    tpu.vector_store %arg5[%c0_16, %c0_17, %c0_18], %30 {strides = array<i32>} : memref<3x8x128xf32, #tpu.memory_space<vmem>>, vector<1x8x128xf32>,
    %c1_19 = arith.constant 1 : index
    %c0_20 = arith.constant 0 : index
    %c0_21 = arith.constant 0 : index
    %31 = vector.load %arg5[%c1_19, %c0_20, %c0_21] : memref<3x8x128xf32, #tpu.memory_space<vmem>>, vector<1x8x128xf32>
    %32 = vector.shape_cast %31 : vector<1x8x128xf32> to vector<8x128xf32>
    %33 = vector.shape_cast %24 : vector<8x128xf32> to vector<1x8x128xf32>
    tpu.vector_store %arg5[%c1_19, %c0_20, %c0_21], %33 {strides = array<i32>} : memref<3x8x128xf32, #tpu.memory_space<vmem>>, vector<1x8x128xf32>,
    %c2_22 = arith.constant 2 : index
    %c0_23 = arith.constant 0 : index
    %c0_24 = arith.constant 0 : index
    %34 = vector.load %arg5[%c2_22, %c0_23, %c0_24] : memref<3x8x128xf32, #tpu.memory_space<vmem>>, vector<1x8x128xf32>
    %35 = vector.shape_cast %34 : vector<1x8x128xf32> to vector<8x128xf32>
    %36 = vector.shape_cast %27 : vector<8x128xf32> to vector<1x8x128xf32>
    tpu.vector_store %arg5[%c2_22, %c0_23, %c0_24], %36 {strides = array<i32>} : memref<3x8x128xf32, #tpu.memory_space<vmem>>, vector<1x8x128xf32>,
    %c0_i32_25 = arith.constant 0 : i32
    %37 = arith.cmpi eq, %arg1, %c0_i32_25 : i32
    %38 = arith.extui %37 : i1 to i32
    %c0_i32_26 = arith.constant 0 : i32
    %39 = arith.cmpi ne, %38, %c0_i32_26 : i32
    scf.if %39 {
      %c0_27 = arith.constant 0 : index
      %c0_28 = arith.constant 0 : index
      %c0_29 = arith.constant 0 : index
      %40 = vector.load %arg5[%c0_27, %c0_28, %c0_29] : memref<3x8x128xf32, #tpu.memory_space<vmem>>, vector<1x8x128xf32>
      %41 = vector.shape_cast %40 : vector<1x8x128xf32> to vector<8x128xf32>
      %42 = vector.shape_cast %41 : vector<8x128xf32> to vector<1x8x128xf32>
      %cst_30 = arith.constant dense<0.000000e+00> : vector<1xf32>
      %43 = vector.multi_reduction <add>, %42, %cst_30 [1, 2] : vector<1x8x128xf32> to vector<1xf32>
      %44 = vector.shape_cast %43 : vector<1xf32> to vector<1x1x1xf32>
      %45 = vector.extract %44[0, 0, 0] : f32 from vector<1x1x1xf32>
      %c0_31 = arith.constant 0 : index
      %c0_32 = arith.constant 0 : index
      %46 = memref.load %arg4[%c0_31, %c0_32] : memref<1x3xf32, #tpu.memory_space<smem>>
      memref.store %45, %arg4[%c0_31, %c0_32] : memref<1x3xf32, #tpu.memory_space<smem>>
      %c1_33 = arith.constant 1 : index
      %c0_34 = arith.constant 0 : index
      %c0_35 = arith.constant 0 : index
      %47 = vector.load %arg5[%c1_33, %c0_34, %c0_35] : memref<3x8x128xf32, #tpu.memory_space<vmem>>, vector<1x8x128xf32>
      %48 = vector.shape_cast %47 : vector<1x8x128xf32> to vector<8x128xf32>
      %49 = vector.shape_cast %48 : vector<8x128xf32> to vector<1x8x128xf32>
      %cst_36 = arith.constant dense<0.000000e+00> : vector<1xf32>
      %50 = vector.multi_reduction <add>, %49, %cst_36 [1, 2] : vector<1x8x128xf32> to vector<1xf32>
      %51 = vector.shape_cast %50 : vector<1xf32> to vector<1x1x1xf32>
      %52 = vector.extract %51[0, 0, 0] : f32 from vector<1x1x1xf32>
      %c0_37 = arith.constant 0 : index
      %c1_38 = arith.constant 1 : index
      %53 = memref.load %arg4[%c0_37, %c1_38] : memref<1x3xf32, #tpu.memory_space<smem>>
      memref.store %52, %arg4[%c0_37, %c1_38] : memref<1x3xf32, #tpu.memory_space<smem>>
      %c2_39 = arith.constant 2 : index
      %c0_40 = arith.constant 0 : index
      %c0_41 = arith.constant 0 : index
      %54 = vector.load %arg5[%c2_39, %c0_40, %c0_41] : memref<3x8x128xf32, #tpu.memory_space<vmem>>, vector<1x8x128xf32>
      %55 = vector.shape_cast %54 : vector<1x8x128xf32> to vector<8x128xf32>
      %56 = vector.shape_cast %55 : vector<8x128xf32> to vector<1x8x128xf32>
      %cst_42 = arith.constant dense<0.000000e+00> : vector<1xf32>
      %57 = vector.multi_reduction <add>, %56, %cst_42 [1, 2] : vector<1x8x128xf32> to vector<1xf32>
      %58 = vector.shape_cast %57 : vector<1xf32> to vector<1x1x1xf32>
      %59 = vector.extract %58[0, 0, 0] : f32 from vector<1x1x1xf32>
      %c0_43 = arith.constant 0 : index
      %c2_44 = arith.constant 2 : index
      %60 = memref.load %arg4[%c0_43, %c2_44] : memref<1x3xf32, #tpu.memory_space<smem>>
      memref.store %59, %arg4[%c0_43, %c2_44] : memref<1x3xf32, #tpu.memory_space<smem>>
    } else {
    }
    return
  }
  func.func @transform_0(%arg0: i32, %arg1: i32) -> (i32, i32) {
    %c1_i32 = arith.constant 1 : i32
    %0 = arith.muli %arg0, %c1_i32 : i32
    %1 = arith.addi %0, %arg1 : i32
    %c0_i32 = arith.constant 0 : i32
    %2 = arith.minsi %1, %c0_i32 : i32
    %c0_i32_0 = arith.constant 0 : i32
    %c0_i32_1 = arith.constant 0 : i32
    return %2, %c0_i32_0 : i32, i32
  }
  func.func @transform_1(%arg0: i32, %arg1: i32) -> (i32, i32) {
    %c1_i32 = arith.constant 1 : i32
    %0 = arith.muli %arg0, %c1_i32 : i32
    %1 = arith.addi %0, %arg1 : i32
    %c0_i32 = arith.constant 0 : i32
    %2 = arith.minsi %1, %c0_i32 : i32
    %c0_i32_0 = arith.constant 0 : i32
    %c0_i32_1 = arith.constant 0 : i32
    return %2, %c0_i32_0 : i32, i32
  }
  func.func @transform_2(%arg0: i32, %arg1: i32) -> (i32, i32) {
    %c0_i32 = arith.constant 0 : i32
    %c0_i32_0 = arith.constant 0 : i32
    return %arg0, %c0_i32 : i32, i32
  }
}

</mosaic_0001>

<llo_original>
// kernel: tpu_custom_call.1
$region0: #{tpu_custom_call.1}
  #allocation0 [shape = 'u32[]', space=smem, size = 0x4, offset = 0x4, fixed_abs, tag = 'smem constant byte address 0x4 - core index']
  #allocation1 [shape = 'u32[144,128]{1,0:T(1,128)}', space=vmem, size = 0x12000, scoped, tag = 'internal scratch']
  #allocation2 [shape = 'f32[3,8,128]{2,1,0:T(8,128)}', space=vmem, size = 0x3000, scoped, tag = 'scratch operand']
  %s0 = inlined_call_operand.hbm [shape: f32[16,128], index: 0, kind: input, shape index: {}]
  %s1 = inlined_call_operand.hbm [shape: f32[16,128], index: 1, kind: input, shape index: {}]
  %s2 = inlined_call_operand.hbm [shape: f32[1,3], index: 2, kind: output, shape index: {}]
  %s3 = sld [smem:[#allocation0]]
  $region34: #{tpu_custom_call.1} parent=0
    _
  %s5 = ssub.s32 1, %s3
  %s6 = scalar_select 0, %s5, %s3
  $region1: #{tpu_custom_call.1} parent=0
    #allocation3 [shape = 'u8[8192]{0}', space=vmem, size = 0x2000, scoped, tag = 'input window, operand 0, single buffered']
    #allocation4 [shape = 's32[1]{0}', space=sflag, size = 0x4, scoped, tag = 'scoped memory for tpu_custom_call.1']
    #allocation5 [shape = 's32[1]{0}', space=sflag, size = 0x4, scoped, tag = 'scoped memory for tpu_custom_call.1']
    #allocation6 [shape = 'u8[8192]{0}', space=vmem, size = 0x2000, scoped, tag = 'input window, operand 1, single buffered']
    #allocation7 [shape = 's32[1]{0}', space=sflag, size = 0x4, scoped, tag = 'scoped memory for tpu_custom_call.1']
    #allocation8 [shape = 'u8[512]{0}', space=smem, size = 0x200, scoped, tag = 'output window, operand 0, single buffered']
    %7 = vsyncpa [#allocation4], 0
    %8 = vsyncpa [#allocation7], 0
    %9 = vsyncpa [#allocation5], 0
    // Predicated region
    $region2: #{tpu_custom_call.1} parent=1 // pred_check
      _
    $region3: #{tpu_custom_call.1} parent=1 // pred_check_branch
      %11 = sbr.rel (0) target = $region5
    $region4: #{tpu_custom_call.1} parent=1 // pred_region
      %s12 = sadd.s32 0, 0
      %p13 = scmp.lt.s32.totalorder %s12, 0
      %s14 = scalar_select %p13, %s12, 0
      %s15 = smul.u32 2, %s14
      %s17 = ssub.s32 256, 256
      %18 = vsyncadd [#allocation4], %s17
      %s19 = smul.addr %s15, 128
      %s20 = scalar_lea.hbm %s0, %s19
      %s21 = sshll.u32 [#allocation3], 4
      %s22 = int_to_ptr.vmem [resolvable:$true] %s21
      %27 = dma.hbm_to_vmem [thread:$0]  %s20, 256, %s22, [#allocation4], 128, 128, 8
    $region5: #{tpu_custom_call.1} parent=1 // pred_fallthru
      _
    // Predicated region
    $region6: #{tpu_custom_call.1} parent=1 // pred_check
      _
    $region7: #{tpu_custom_call.1} parent=1 // pred_check_branch
      %29 = sbr.rel (0) target = $region9
    $region8: #{tpu_custom_call.1} parent=1 // pred_region
      %s30 = sadd.s32 0, 0
      %p31 = scmp.lt.s32.totalorder %s30, 0
      %s32 = scalar_select %p31, %s30, 0
      %s33 = smul.u32 2, %s32
      %s35 = ssub.s32 256, 256
      %36 = vsyncadd [#allocation7], %s35
      %s37 = smul.addr %s33, 128
      %s38 = scalar_lea.hbm %s1, %s37
      %s39 = sshll.u32 [#allocation6], 4
      %s40 = int_to_ptr.vmem [resolvable:$true] %s39
      %45 = dma.hbm_to_vmem [thread:$0]  %s38, 256, %s40, [#allocation7], 128, 128, 8
    $region9: #{tpu_custom_call.1} parent=1 // pred_fallthru
      _
    // Predicated region
    $region10: #{tpu_custom_call.1} parent=1 // pred_check
      _
    $region11: #{tpu_custom_call.1} parent=1 // pred_check_branch
      %47 = sbr.rel (0) target = $region13
    $region12: #{tpu_custom_call.1} parent=1 // pred_region
      %48 = dma.done [#allocation4], 256
    $region13: #{tpu_custom_call.1} parent=1 // pred_fallthru
      _
    // Predicated region
    $region14: #{tpu_custom_call.1} parent=1 // pred_check
      _
    $region15: #{tpu_custom_call.1} parent=1 // pred_check_branch
      %50 = sbr.rel (0) target = $region17
    $region16: #{tpu_custom_call.1} parent=1 // pred_region
      %51 = dma.done [#allocation7], 256
    $region17: #{tpu_custom_call.1} parent=1 // pred_fallthru
      _
    %s52 = sadd.s32 0, 0
    %p53 = scmp.lt.s32.totalorder %s52, 0
    %s54 = scalar_select %p53, %s52, 0
    %s55 = smul.u32 2, %s54
    %s56 = sadd.s32 0, 0
    %p57 = scmp.lt.s32.totalorder %s56, 0
    %s58 = scalar_select %p57, %s56, 0
    %s59 = smul.u32 2, %s58
    %p60 = scmp.eq.s32.totalorder 0, 0
    // Predicated region
    $region18: #{tpu_custom_call.1} parent=1 // pred_check
      %p61 = pneg %p60
    $region19: #{tpu_custom_call.1} parent=1 // pred_check_branch
      %63 = sbr.rel (%p61) target = $region21
    $region20: #{tpu_custom_call.1} parent=1 // pred_region
      %64 = vst [vmem:[#allocation2] sm:$0xff] 0.0
      %65 = vst [vmem:[#allocation2 + $0x8] sm:$0xff] 0.0
      %66 = vst [vmem:[#allocation2 + $0x10] sm:$0xff] 0.0
    $region21: #{tpu_custom_call.1} parent=1 // pred_fallthru
      _
    %v67 = vld [vmem:[#allocation2] sm:$0xff]
    %s68 = scalar_lea.vmem [#allocation2], 8
    %v69 = vld [vmem:[%s68] sm:$0xff]
    %s70 = scalar_lea.vmem [#allocation2], 16
    %v71 = vld [vmem:[%s70] sm:$0xff]
    %v72 = vld [vmem:[#allocation3] sm:$0xff]
    %v73 = vld [vmem:[#allocation3 + $0x8] sm:$0xff]
    %v74 = vld [vmem:[#allocation6] sm:$0xff]
    %v75 = vld [vmem:[#allocation6 + $0x8] sm:$0xff]
    %v76 = vmul.f32 %v72, 0.5
    %v77 = vmul.f32 %v73, 0.5
    %v78 = vtanh.pop %v76
    %v79 = vtanh.pop %v77
    %v80 = vmul.f32 %v78, 0.5
    %v81 = vmul.f32 %v79, 0.5
    %v82 = vadd.f32 %v80, 0.5
    %v83 = vadd.f32 %v81, 0.5
    %v84 = vmul.f32 %v82, %v74
    %v85 = vmul.f32 %v83, %v75
    %v86 = vadd.f32 %v84, %v85
    %v87 = vadd.f32 %v67, %v86
    %v88 = vadd.f32 %v82, %v83
    %v89 = vadd.f32 %v69, %v88
    %v90 = vadd.f32 %v74, %v75
    %v91 = vadd.f32 %v71, %v90
    %92 = vst [vmem:[#allocation2] sm:$0xff] %v87
    %93 = vst [vmem:[%s68] sm:$0xff] %v89
    %94 = vst [vmem:[%s70] sm:$0xff] %v91
    // Predicated region
    $region22: #{tpu_custom_call.1} parent=1 // pred_check
      %p95 = pneg %p60
    $region23: #{tpu_custom_call.1} parent=1 // pred_check_branch
      %97 = sbr.rel (%p95) target = $region25
    $region24: #{tpu_custom_call.1} parent=1 // pred_region
      %v98 = vld [vmem:[#allocation2] sm:$0xff]
      %99 = vadd.xlane.f32.xlu0 %v98
      %v100 = vpop.xlane.xlu0 %99
      %v101 = vrot.slane %v100, 4
      %v102 = vadd.f32 %v100, %v101
      %v103 = vrot.slane %v102, 2
      %v104 = vadd.f32 %v102, %v103
      %v105 = vrot.slane %v104, 1
      %v106 = vadd.f32 %v104, %v105
      %s107 = vtos %v106
      %s108 = scalar_lea.smem [#allocation8], 0
      %109 = sst [smem:[%s108]] %s107
      %v110 = vld [vmem:[%s68] sm:$0xff]
      %111 = vadd.xlane.f32.xlu0 %v110
      %v112 = vpop.xlane.xlu0 %111
      %v113 = vrot.slane %v112, 4
      %v114 = vadd.f32 %v112, %v113
      %v115 = vrot.slane %v114, 2
      %v116 = vadd.f32 %v114, %v115
      %v117 = vrot.slane %v116, 1
      %v118 = vadd.f32 %v116, %v117
      %s119 = vtos %v118
      %s120 = scalar_lea.smem [#allocation8], 1
      %121 = sst [smem:[%s120]] %s119
      %v122 = vld [vmem:[%s70] sm:$0xff]
      %123 = vadd.xlane.f32.xlu0 %v122
      %v124 = vpop.xlane.xlu0 %123
      %v125 = vrot.slane %v124, 4
      %v126 = vadd.f32 %v124, %v125
      %v127 = vrot.slane %v126, 2
      %v128 = vadd.f32 %v126, %v127
      %v129 = vrot.slane %v128, 1
      %v130 = vadd.f32 %v128, %v129
      %s131 = vtos %v130
      %s132 = scalar_lea.smem [#allocation8], 2
      %133 = sst [smem:[%s132]] %s131
    $region25: #{tpu_custom_call.1} parent=1 // pred_fallthru
      _
    // Predicated region
    $region26: #{tpu_custom_call.1} parent=1 // pred_check
      _
    $region27: #{tpu_custom_call.1} parent=1 // pred_check_branch
      %135 = sbr.rel (0) target = $region29
    $region28: #{tpu_custom_call.1} parent=1 // pred_region
      %s137 = ssub.s32 16, 16
      %138 = vsyncadd [#allocation5], %s137
      %141 = dma.smem_to_hbm [#allocation8], 16, %s2, [#allocation5]
    $region29: #{tpu_custom_call.1} parent=1 // pred_fallthru
      _
    // Predicated region
    $region30: #{tpu_custom_call.1} parent=1 // pred_check
      _
    $region31: #{tpu_custom_call.1} parent=1 // pred_check_branch
      %143 = sbr.rel (0) target = $region33
    $region32: #{tpu_custom_call.1} parent=1 // pred_region
      %144 = dma.done [#allocation5], 16
    $region33: #{tpu_custom_call.1} parent=1 // pred_fallthru
      _
    %145 = sfence
    %146 = vsyncpa [#allocation4], 1
    %147 = vsyncpa [#allocation7], 1
    %148 = vsyncpa [#allocation5], 1

</llo_original>
